<compile_context>
chip_gen: v5e
topology: v5e:2x2
jax: 0.10.0
libtpu: 0.0.40
codegen_flags: <defaults>
</compile_context>

<pallas_src>
import functools

import jax
import jax.numpy as jnp
from jax import lax
from jax.experimental import pallas as pl
from jax.experimental.pallas import tpu as pltpu


def _resblock_kernel(col_ref, x_ref, w1_ref, w2_ref, wd_ref, bd_ref, o_ref,
                     slab1_ref, slab2_ref, *, H, W, has_downsample):
    """Fused ResBlock forward for one image, channels-first flat layout.

    col_ref  : (1, HW)  int32   x-coordinate (column) of every flat pixel
    x_ref    : (1, Cin, HW) f32 input image (flattened NCHW)
    w1_ref   : (Cout, 9*Cin)  bf16  conv1 im2col weights, col = (ky*3+kx)*Cin+c
    w2_ref   : (Cout, 9*Cout) bf16  conv2 im2col weights
    wd_ref   : (Cout, Cin)    bf16  1x1 downsample weights (unused if Cin==Cout)
    bd_ref   : (Cout, 1)      f32   downsample bias        (unused if Cin==Cout)
    o_ref    : (1, Cout, HW)  f32   relu(conv2(relu(conv1(x))) + identity)
    slab1_ref: (9*Cin, HW)    f32   VMEM im2col slab for conv1
    slab2_ref: (9*Cout, HW)   f32   VMEM im2col slab for conv2
    """
    HW = H * W
    col = col_ref[...]                      # (1, HW)
    x = x_ref[0]                            # (Cin, HW) f32

    def build_im2col(img, slab_ref):
        """Write the 9 shifted+masked taps of img (C, HW) into slab_ref (9C, HW).

        Tap (dy, dx): out[i] = img[i + dy*W + dx] when the source pixel is in
        bounds, else 0.  Horizontal (dx) out-of-bounds pixels are zeroed by
        masking the *source* columns (dx=+1 -> source col 0, dx=-1 -> source
        col W-1); vertical (dy) out-of-bounds pixels land in the zero-filled
        lane strip at the end/start of the shifted window.
        """
        C = img.shape[0]
        src_by_dx = {
            -1: jnp.where(col != W - 1, img, 0.0),
            0: img,
            1: jnp.where(col != 0, img, 0.0),
        }
        k = 0
        for dy in (-1, 0, 1):
            for dx in (-1, 0, 1):
                d = dy * W + dx
                src = src_by_dx[dx]
                r0 = k * C
                if d == 0:
                    slab_ref[r0:r0 + C, :] = src
                elif d > 0:
                    slab_ref[r0:r0 + C, 0:HW - d] = src[:, d:HW]
                    slab_ref[r0:r0 + C, HW - d:HW] = jnp.zeros((C, d), src.dtype)
                else:
                    slab_ref[r0:r0 + C, -d:HW] = src[:, 0:HW + d]
                    slab_ref[r0:r0 + C, 0:-d] = jnp.zeros((C, -d), src.dtype)
                k += 1

    # ---- conv1 (3x3, SAME) + ReLU: one deep-K MXU matmul, lane-dense N=HW ----
    build_im2col(x, slab1_ref)
    y1 = jnp.maximum(
        jnp.dot(w1_ref[...], slab1_ref[...].astype(jnp.bfloat16),
                preferred_element_type=jnp.float32),
        0.0)                                                     # (Cout, HW) f32

    # ---- identity branch (1x1 conv + bias iff Cin != Cout), f32 epilogue ----
    if has_downsample:
        acc = (jnp.dot(wd_ref[...], x.astype(jnp.bfloat16),
                       preferred_element_type=jnp.float32)
               + bd_ref[...])                                    # (Cout, HW) f32
    else:
        acc = x                                                  # Cin == Cout

    # ---- conv2 (3x3, SAME) + residual add + ReLU ----------------------------
    build_im2col(y1, slab2_ref)
    acc = acc + jnp.dot(w2_ref[...], slab2_ref[...].astype(jnp.bfloat16),
                        preferred_element_type=jnp.float32)
    o_ref[0] = jnp.maximum(acc, 0.0).astype(o_ref.dtype)


def resblock_forward(x_nchw, w1_oihw, w2_oihw, wd_oihw=None, bd=None):
    """x_nchw: (B,Cin,H,W); w1_oihw: (Cout,Cin,3,3); w2_oihw: (Cout,Cout,3,3);
    wd_oihw: (Cout,Cin,1,1); bd: (Cout,). Returns (B,Cout,H,W) float32."""
    B, Cin, H, W = x_nchw.shape
    Cout = w1_oihw.shape[0]
    HW = H * W
    has_downsample = (Cin != Cout)           # mirrors the PyTorch module
    if wd_oihw is None:
        wd_oihw = jnp.zeros((Cout, Cin, 1, 1), jnp.float32)
    if bd is None:
        bd = jnp.zeros((Cout,), jnp.float32)

    # im2col weight matrices, tap-major K ordering: col = (ky*3+kx)*C + c.
    # bf16 staging for the MXU; accumulation stays f32 in-kernel.
    w1_mat = jnp.transpose(w1_oihw, (0, 2, 3, 1)).reshape(Cout, 9 * Cin)
    w2_mat = jnp.transpose(w2_oihw, (0, 2, 3, 1)).reshape(Cout, 9 * Cout)
    w1_mat = w1_mat.astype(jnp.bfloat16)
    w2_mat = w2_mat.astype(jnp.bfloat16)
    wd_mat = wd_oihw.reshape(Cout, Cin).astype(jnp.bfloat16)
    bd2 = bd.reshape(Cout, 1).astype(jnp.float32)

    x_flat = x_nchw.reshape(B, Cin, HW)
    col_ids = (jnp.arange(HW, dtype=jnp.int32) % W).reshape(1, HW)

    kernel = functools.partial(_resblock_kernel, H=H, W=W,
                               has_downsample=has_downsample)
    out = pl.pallas_call(
        kernel,
        out_shape=jax.ShapeDtypeStruct((B, Cout, HW), jnp.float32),
        grid_spec=pltpu.PrefetchScalarGridSpec(
            num_scalar_prefetch=0,
            grid=(B,),
            in_specs=[
                pl.BlockSpec((1, HW), lambda b: (0, 0)),            # col ids
                pl.BlockSpec((1, Cin, HW), lambda b: (b, 0, 0)),    # x
                pl.BlockSpec((Cout, 9 * Cin), lambda b: (0, 0)),    # conv1 W
                pl.BlockSpec((Cout, 9 * Cout), lambda b: (0, 0)),   # conv2 W
                pl.BlockSpec((Cout, Cin), lambda b: (0, 0)),        # 1x1 W
                pl.BlockSpec((Cout, 1), lambda b: (0, 0)),          # 1x1 bias
            ],
            out_specs=pl.BlockSpec((1, Cout, HW), lambda b: (b, 0, 0)),
            scratch_shapes=[
                pltpu.VMEM((9 * Cin, HW), jnp.float32),   # im2col slab, conv1
                pltpu.VMEM((9 * Cout, HW), jnp.float32),  # im2col slab, conv2
            ],
        ),
        compiler_params=pltpu.CompilerParams(
            dimension_semantics=("parallel",)),
    )(col_ids, x_flat, w1_mat, w2_mat, wd_mat, bd2)
    return out.reshape(B, Cout, H, W)


def reference_resblock(x_nchw, w1, w2, wd, bd):
    dn = ("NCHW", "OIHW", "NCHW")
    prec = lax.Precision.HIGHEST
    Cin, Cout = x_nchw.shape[1], w1.shape[0]
    if Cin != Cout:
        ident = lax.conv_general_dilated(x_nchw, wd, (1, 1), "SAME",
                                         dimension_numbers=dn, precision=prec)
        ident = ident + bd.reshape(1, -1, 1, 1)
    else:
        ident = x_nchw
    y1 = jax.nn.relu(lax.conv_general_dilated(x_nchw, w1, (1, 1), "SAME",
                                              dimension_numbers=dn,
                                              precision=prec))
    y2 = lax.conv_general_dilated(y1, w2, (1, 1), "SAME",
                                  dimension_numbers=dn, precision=prec)
    return jax.nn.relu(y2 + ident)


if __name__ == "__main__":
    key = jax.random.PRNGKey(0)
    configs = [
        dict(B=2, H=16, W=16, Cin=4, Cout=8),   # Cin != Cout -> 1x1 downsample
        dict(B=2, H=16, W=16, Cin=8, Cout=8),   # identity skip path
    ]
    for cfg in configs:
        B, H, W = cfg["B"], cfg["H"], cfg["W"]
        Cin, Cout = cfg["Cin"], cfg["Cout"]
        key, kx_, k1, k2, kd, kb = jax.random.split(key, 6)

        # PyTorch-native layouts: NCHW input, OIHW weights.
        x = jax.random.normal(kx_, (B, Cin, H, W), jnp.float32)
        w1 = 0.1 * jax.random.normal(k1, (Cout, Cin, 3, 3), jnp.float32)
        w2 = 0.1 * jax.random.normal(k2, (Cout, Cout, 3, 3), jnp.float32)
        wd = 0.1 * jax.random.normal(kd, (Cout, Cin, 1, 1), jnp.float32)
        bd = 0.1 * jax.random.normal(kb, (Cout,), jnp.float32)

        out = resblock_forward(x, w1, w2, wd, bd)
        out = jax.block_until_ready(out)
        ref = reference_resblock(x, w1, w2, wd, bd)

        assert out.shape == (B, Cout, H, W)
        err = float(jnp.max(jnp.abs(out - ref)))
        # bf16 MXU staging (f32 accumulation) vs a Precision.HIGHEST reference.
        assert jnp.allclose(out, ref, atol=2e-2, rtol=2e-2), f"max err {err}"

    print("KERNEL_OK")
</pallas_src>

<mosaic_0001>
module attributes {stable_mosaic.version = 11 : i64} {
  func.func @_resblock_kernel(%arg0: i32, %arg1: memref<1x256xi32, #tpu.memory_space<vmem>>, %arg2: memref<1x4x256xf32, #tpu.memory_space<vmem>>, %arg3: memref<8x36xbf16, #tpu.memory_space<vmem>>, %arg4: memref<8x72xbf16, #tpu.memory_space<vmem>>, %arg5: memref<8x4xbf16, #tpu.memory_space<vmem>>, %arg6: memref<8x1xf32, #tpu.memory_space<vmem>>, %arg7: memref<1x8x256xf32, #tpu.memory_space<vmem>>, %arg8: memref<36x256xf32, #tpu.memory_space<vmem>>, %arg9: memref<72x256xf32, #tpu.memory_space<vmem>>) attributes {dimension_semantics = [#tpu.dimension_semantics<parallel>], iteration_bounds = array<i64: 2>, scalar_prefetch = 0 : i64, scratch_operands = 2 : i64, tpu.core_type = #tpu.core_type<tc>, window_params = [{pipeline_mode = #tpu.pipeline_mode<synchronous>, transform_indices = @transform_0, window_bounds = array<i64: 1, 256>}, {transform_indices = @transform_1, window_bounds = array<i64: 1, 4, 256>}, {pipeline_mode = #tpu.pipeline_mode<synchronous>, transform_indices = @transform_2, window_bounds = array<i64: 8, 36>}, {pipeline_mode = #tpu.pipeline_mode<synchronous>, transform_indices = @transform_3, window_bounds = array<i64: 8, 72>}, {pipeline_mode = #tpu.pipeline_mode<synchronous>, transform_indices = @transform_4, window_bounds = array<i64: 8, 4>}, {pipeline_mode = #tpu.pipeline_mode<synchronous>, transform_indices = @transform_5, window_bounds = array<i64: 8, 1>}, {transform_indices = @transform_6, window_bounds = array<i64: 1, 8, 256>}]} {
    %c0 = arith.constant 0 : index
    %c0_0 = arith.constant 0 : index
    %0 = vector.load %arg1[%c0, %c0_0] : memref<1x256xi32, #tpu.memory_space<vmem>>, vector<1x256xi32>
    %c0_1 = arith.constant 0 : index
    %c0_2 = arith.constant 0 : index
    %c0_3 = arith.constant 0 : index
    %1 = vector.load %arg2[%c0_1, %c0_2, %c0_3] : memref<1x4x256xf32, #tpu.memory_space<vmem>>, vector<1x4x256xf32>
    %2 = vector.shape_cast %1 : vector<1x4x256xf32> to vector<4x256xf32>
    %c15_i32 = arith.constant 15 : i32
    %3 = vector.broadcast %c15_i32 : i32 to vector<1x256xi32>
    %4 = arith.cmpi ne, %0, %3 : vector<1x256xi32>
    %cst = arith.constant 0.000000e+00 : f32
    %5 = vector.shape_cast %4 : vector<1x256xi1> to vector<1x256xi1>
    %6 = vector.broadcast %5 : vector<1x256xi1> to vector<4x256xi1>
    %7 = vector.broadcast %cst : f32 to vector<4x256xf32>
    %8 = arith.select %6, %2, %7 : vector<4x256xi1>, vector<4x256xf32>
    %c0_i32 = arith.constant 0 : i32
    %9 = vector.broadcast %c0_i32 : i32 to vector<1x256xi32>
    %10 = arith.cmpi ne, %0, %9 : vector<1x256xi32>
    %cst_4 = arith.constant 0.000000e+00 : f32
    %11 = vector.shape_cast %10 : vector<1x256xi1> to vector<1x256xi1>
    %12 = vector.broadcast %11 : vector<1x256xi1> to vector<4x256xi1>
    %13 = vector.broadcast %cst_4 : f32 to vector<4x256xf32>
    %14 = arith.select %12, %2, %13 : vector<4x256xi1>, vector<4x256xf32>
    %15 = vector.extract_strided_slice %8 {offsets = [0, 0], sizes = [4, 239], strides = [1, 1]} : vector<4x256xf32> to vector<4x239xf32>
    %c0_5 = arith.constant 0 : index
    %c17 = arith.constant 17 : index
    %16 = vector.load %arg8[%c0_5, %c17] : memref<36x256xf32, #tpu.memory_space<vmem>>, vector<4x239xf32>
    tpu.vector_store %arg8[%c0_5, %c17], %15 {strides = array<i32>} : memref<36x256xf32, #tpu.memory_space<vmem>>, vector<4x239xf32>,
    %cst_6 = arith.constant 0.000000e+00 : f32
    %17 = vector.broadcast %cst_6 : f32 to vector<4x17xf32>
    %c0_7 = arith.constant 0 : index
    %c0_8 = arith.constant 0 : index
    %18 = vector.load %arg8[%c0_7, %c0_8] : memref<36x256xf32, #tpu.memory_space<vmem>>, vector<4x17xf32>
    tpu.vector_store %arg8[%c0_7, %c0_8], %17 {strides = array<i32>} : memref<36x256xf32, #tpu.memory_space<vmem>>, vector<4x17xf32>,
    %19 = vector.extract_strided_slice %2 {offsets = [0, 0], sizes = [4, 240], strides = [1, 1]} : vector<4x256xf32> to vector<4x240xf32>
    %c4 = arith.constant 4 : index
    %c16 = arith.constant 16 : index
    %20 = vector.load %arg8[%c4, %c16] : memref<36x256xf32, #tpu.memory_space<vmem>>, vector<4x240xf32>
    tpu.vector_store %arg8[%c4, %c16], %19 {strides = array<i32>} : memref<36x256xf32, #tpu.memory_space<vmem>>, vector<4x240xf32>,
    %cst_9 = arith.constant 0.000000e+00 : f32
    %21 = vector.broadcast %cst_9 : f32 to vector<4x16xf32>
    %c4_10 = arith.constant 4 : index
    %c0_11 = arith.constant 0 : index
    %22 = vector.load %arg8[%c4_10, %c0_11] : memref<36x256xf32, #tpu.memory_space<vmem>>, vector<4x16xf32>
    tpu.vector_store %arg8[%c4_10, %c0_11], %21 {strides = array<i32>} : memref<36x256xf32, #tpu.memory_space<vmem>>, vector<4x16xf32>,
    %23 = vector.extract_strided_slice %14 {offsets = [0, 0], sizes = [4, 241], strides = [1, 1]} : vector<4x256xf32> to vector<4x241xf32>
    %c8 = arith.constant 8 : index
    %c15 = arith.constant 15 : index
    %24 = vector.load %arg8[%c8, %c15] : memref<36x256xf32, #tpu.memory_space<vmem>>, vector<4x241xf32>
    tpu.vector_store %arg8[%c8, %c15], %23 {strides = array<i32>} : memref<36x256xf32, #tpu.memory_space<vmem>>, vector<4x241xf32>,
    %cst_12 = arith.constant 0.000000e+00 : f32
    %25 = vector.broadcast %cst_12 : f32 to vector<4x15xf32>
    %c8_13 = arith.constant 8 : index
    %c0_14 = arith.constant 0 : index
    %26 = vector.load %arg8[%c8_13, %c0_14] : memref<36x256xf32, #tpu.memory_space<vmem>>, vector<4x15xf32>
    tpu.vector_store %arg8[%c8_13, %c0_14], %25 {strides = array<i32>} : memref<36x256xf32, #tpu.memory_space<vmem>>, vector<4x15xf32>,
    %27 = vector.extract_strided_slice %8 {offsets = [0, 0], sizes = [4, 255], strides = [1, 1]} : vector<4x256xf32> to vector<4x255xf32>
    %c12 = arith.constant 12 : index
    %c1 = arith.constant 1 : index
    %28 = vector.load %arg8[%c12, %c1] : memref<36x256xf32, #tpu.memory_space<vmem>>, vector<4x255xf32>
    tpu.vector_store %arg8[%c12, %c1], %27 {strides = array<i32>} : memref<36x256xf32, #tpu.memory_space<vmem>>, vector<4x255xf32>,
    %cst_15 = arith.constant 0.000000e+00 : f32
    %29 = vector.broadcast %cst_15 : f32 to vector<4x1xf32>
    %c12_16 = arith.constant 12 : index
    %c0_17 = arith.constant 0 : index
    %30 = vector.load %arg8[%c12_16, %c0_17] : memref<36x256xf32, #tpu.memory_space<vmem>>, vector<4x1xf32>
    tpu.vector_store %arg8[%c12_16, %c0_17], %29 {strides = array<i32>} : memref<36x256xf32, #tpu.memory_space<vmem>>, vector<4x1xf32>,
    %c16_18 = arith.constant 16 : index
    %c0_19 = arith.constant 0 : index
    %31 = vector.load %arg8[%c16_18, %c0_19] : memref<36x256xf32, #tpu.memory_space<vmem>>, vector<4x256xf32>
    tpu.vector_store %arg8[%c16_18, %c0_19], %2 {strides = array<i32>} : memref<36x256xf32, #tpu.memory_space<vmem>>, vector<4x256xf32>,
    %32 = vector.extract_strided_slice %14 {offsets = [0, 1], sizes = [4, 255], strides = [1, 1]} : vector<4x256xf32> to vector<4x255xf32>
    %c20 = arith.constant 20 : index
    %c0_20 = arith.constant 0 : index
    %33 = vector.load %arg8[%c20, %c0_20] : memref<36x256xf32, #tpu.memory_space<vmem>>, vector<4x255xf32>
    tpu.vector_store %arg8[%c20, %c0_20], %32 {strides = array<i32>} : memref<36x256xf32, #tpu.memory_space<vmem>>, vector<4x255xf32>,
    %cst_21 = arith.constant 0.000000e+00 : f32
    %34 = vector.broadcast %cst_21 : f32 to vector<4x1xf32>
    %c20_22 = arith.constant 20 : index
    %c255 = arith.constant 255 : index
    %35 = vector.load %arg8[%c20_22, %c255] : memref<36x256xf32, #tpu.memory_space<vmem>>, vector<4x1xf32>
    tpu.vector_store %arg8[%c20_22, %c255], %34 {strides = array<i32>} : memref<36x256xf32, #tpu.memory_space<vmem>>, vector<4x1xf32>,
    %36 = vector.extract_strided_slice %8 {offsets = [0, 15], sizes = [4, 241], strides = [1, 1]} : vector<4x256xf32> to vector<4x241xf32>
    %c24 = arith.constant 24 : index
    %c0_23 = arith.constant 0 : index
    %37 = vector.load %arg8[%c24, %c0_23] : memref<36x256xf32, #tpu.memory_space<vmem>>, vector<4x241xf32>
    tpu.vector_store %arg8[%c24, %c0_23], %36 {strides = array<i32>} : memref<36x256xf32, #tpu.memory_space<vmem>>, vector<4x241xf32>,
    %cst_24 = arith.constant 0.000000e+00 : f32
    %38 = vector.broadcast %cst_24 : f32 to vector<4x15xf32>
    %c24_25 = arith.constant 24 : index
    %c241 = arith.constant 241 : index
    %39 = vector.load %arg8[%c24_25, %c241] : memref<36x256xf32, #tpu.memory_space<vmem>>, vector<4x15xf32>
    tpu.vector_store %arg8[%c24_25, %c241], %38 {strides = array<i32>} : memref<36x256xf32, #tpu.memory_space<vmem>>, vector<4x15xf32>,
    %40 = vector.extract_strided_slice %2 {offsets = [0, 16], sizes = [4, 240], strides = [1, 1]} : vector<4x256xf32> to vector<4x240xf32>
    %c28 = arith.constant 28 : index
    %c0_26 = arith.constant 0 : index
    %41 = vector.load %arg8[%c28, %c0_26] : memref<36x256xf32, #tpu.memory_space<vmem>>, vector<4x240xf32>
    tpu.vector_store %arg8[%c28, %c0_26], %40 {strides = array<i32>} : memref<36x256xf32, #tpu.memory_space<vmem>>, vector<4x240xf32>,
    %cst_27 = arith.constant 0.000000e+00 : f32
    %42 = vector.broadcast %cst_27 : f32 to vector<4x16xf32>
    %c28_28 = arith.constant 28 : index
    %c240 = arith.constant 240 : index
    %43 = vector.load %arg8[%c28_28, %c240] : memref<36x256xf32, #tpu.memory_space<vmem>>, vector<4x16xf32>
    tpu.vector_store %arg8[%c28_28, %c240], %42 {strides = array<i32>} : memref<36x256xf32, #tpu.memory_space<vmem>>, vector<4x16xf32>,
    %44 = vector.extract_strided_slice %14 {offsets = [0, 17], sizes = [4, 239], strides = [1, 1]} : vector<4x256xf32> to vector<4x239xf32>
    %c32 = arith.constant 32 : index
    %c0_29 = arith.constant 0 : index
    %45 = vector.load %arg8[%c32, %c0_29] : memref<36x256xf32, #tpu.memory_space<vmem>>, vector<4x239xf32>
    tpu.vector_store %arg8[%c32, %c0_29], %44 {strides = array<i32>} : memref<36x256xf32, #tpu.memory_space<vmem>>, vector<4x239xf32>,
    %cst_30 = arith.constant 0.000000e+00 : f32
    %46 = vector.broadcast %cst_30 : f32 to vector<4x17xf32>
    %c32_31 = arith.constant 32 : index
    %c239 = arith.constant 239 : index
    %47 = vector.load %arg8[%c32_31, %c239] : memref<36x256xf32, #tpu.memory_space<vmem>>, vector<4x17xf32>
    tpu.vector_store %arg8[%c32_31, %c239], %46 {strides = array<i32>} : memref<36x256xf32, #tpu.memory_space<vmem>>, vector<4x17xf32>,
    %c0_32 = arith.constant 0 : index
    %c0_33 = arith.constant 0 : index
    %48 = vector.load %arg3[%c0_32, %c0_33] : memref<8x36xbf16, #tpu.memory_space<vmem>>, vector<8x36xbf16>
    %c0_34 = arith.constant 0 : index
    %c0_35 = arith.constant 0 : index
    %49 = vector.load %arg8[%c0_34, %c0_35] : memref<36x256xf32, #tpu.memory_space<vmem>>, vector<36x256xf32>
    %50 = arith.truncf %49 : vector<36x256xf32> to vector<36x256xbf16>
    %cst_36 = arith.constant dense<0.000000e+00> : vector<8x256xf32>
    %51 = tpu.matmul %48, %50, %cst_36 {dimension_numbers = #tpu.dot_dimension_numbers<[1], [0], [0], [1], [0, 0, 1, 1], [], []>} : vector<8x36xbf16>, vector<36x256xbf16>, vector<8x256xf32> -> vector<8x256xf32>
    %cst_37 = arith.constant 0.000000e+00 : f32
    %52 = vector.broadcast %cst_37 : f32 to vector<8x256xf32>
    %53 = arith.maximumf %51, %52 : vector<8x256xf32>
    %c0_38 = arith.constant 0 : index
    %c0_39 = arith.constant 0 : index
    %54 = vector.load %arg5[%c0_38, %c0_39] : memref<8x4xbf16, #tpu.memory_space<vmem>>, vector<8x4xbf16>
    %55 = arith.truncf %2 : vector<4x256xf32> to vector<4x256xbf16>
    %cst_40 = arith.constant dense<0.000000e+00> : vector<8x256xf32>
    %56 = tpu.matmul %54, %55, %cst_40 {dimension_numbers = #tpu.dot_dimension_numbers<[1], [0], [0], [1], [0, 0, 1, 1], [], []>} : vector<8x4xbf16>, vector<4x256xbf16>, vector<8x256xf32> -> vector<8x256xf32>
    %c0_41 = arith.constant 0 : index
    %c0_42 = arith.constant 0 : index
    %57 = vector.load %arg6[%c0_41, %c0_42] : memref<8x1xf32, #tpu.memory_space<vmem>>, vector<8x1xf32>
    %58 = vector.broadcast %57 : vector<8x1xf32> to vector<8x256xf32>
    %59 = arith.addf %56, %58 : vector<8x256xf32>
    %c15_i32_43 = arith.constant 15 : i32
    %60 = vector.broadcast %c15_i32_43 : i32 to vector<1x256xi32>
    %61 = arith.cmpi ne, %0, %60 : vector<1x256xi32>
    %cst_44 = arith.constant 0.000000e+00 : f32
    %62 = vector.shape_cast %61 : vector<1x256xi1> to vector<1x256xi1>
    %63 = vector.broadcast %62 : vector<1x256xi1> to vector<8x256xi1>
    %64 = vector.broadcast %cst_44 : f32 to vector<8x256xf32>
    %65 = arith.select %63, %53, %64 : vector<8x256xi1>, vector<8x256xf32>
    %c0_i32_45 = arith.constant 0 : i32
    %66 = vector.broadcast %c0_i32_45 : i32 to vector<1x256xi32>
    %67 = arith.cmpi ne, %0, %66 : vector<1x256xi32>
    %cst_46 = arith.constant 0.000000e+00 : f32
    %68 = vector.shape_cast %67 : vector<1x256xi1> to vector<1x256xi1>
    %69 = vector.broadcast %68 : vector<1x256xi1> to vector<8x256xi1>
    %70 = vector.broadcast %cst_46 : f32 to vector<8x256xf32>
    %71 = arith.select %69, %53, %70 : vector<8x256xi1>, vector<8x256xf32>
    %72 = vector.extract_strided_slice %65 {offsets = [0, 0], sizes = [8, 239], strides = [1, 1]} : vector<8x256xf32> to vector<8x239xf32>
    %c0_47 = arith.constant 0 : index
    %c17_48 = arith.constant 17 : index
    %73 = vector.load %arg9[%c0_47, %c17_48] : memref<72x256xf32, #tpu.memory_space<vmem>>, vector<8x239xf32>
    tpu.vector_store %arg9[%c0_47, %c17_48], %72 {strides = array<i32>} : memref<72x256xf32, #tpu.memory_space<vmem>>, vector<8x239xf32>,
    %cst_49 = arith.constant 0.000000e+00 : f32
    %74 = vector.broadcast %cst_49 : f32 to vector<8x17xf32>
    %c0_50 = arith.constant 0 : index
    %c0_51 = arith.constant 0 : index
    %75 = vector.load %arg9[%c0_50, %c0_51] : memref<72x256xf32, #tpu.memory_space<vmem>>, vector<8x17xf32>
    tpu.vector_store %arg9[%c0_50, %c0_51], %74 {strides = array<i32>} : memref<72x256xf32, #tpu.memory_space<vmem>>, vector<8x17xf32>,
    %76 = vector.extract_strided_slice %53 {offsets = [0, 0], sizes = [8, 240], strides = [1, 1]} : vector<8x256xf32> to vector<8x240xf32>
    %c8_52 = arith.constant 8 : index
    %c16_53 = arith.constant 16 : index
    %77 = vector.load %arg9[%c8_52, %c16_53] : memref<72x256xf32, #tpu.memory_space<vmem>>, vector<8x240xf32>
    tpu.vector_store %arg9[%c8_52, %c16_53], %76 {strides = array<i32>} : memref<72x256xf32, #tpu.memory_space<vmem>>, vector<8x240xf32>,
    %cst_54 = arith.constant 0.000000e+00 : f32
    %78 = vector.broadcast %cst_54 : f32 to vector<8x16xf32>
    %c8_55 = arith.constant 8 : index
    %c0_56 = arith.constant 0 : index
    %79 = vector.load %arg9[%c8_55, %c0_56] : memref<72x256xf32, #tpu.memory_space<vmem>>, vector<8x16xf32>
    tpu.vector_store %arg9[%c8_55, %c0_56], %78 {strides = array<i32>} : memref<72x256xf32, #tpu.memory_space<vmem>>, vector<8x16xf32>,
    %80 = vector.extract_strided_slice %71 {offsets = [0, 0], sizes = [8, 241], strides = [1, 1]} : vector<8x256xf32> to vector<8x241xf32>
    %c16_57 = arith.constant 16 : index
    %c15_58 = arith.constant 15 : index
    %81 = vector.load %arg9[%c16_57, %c15_58] : memref<72x256xf32, #tpu.memory_space<vmem>>, vector<8x241xf32>
    tpu.vector_store %arg9[%c16_57, %c15_58], %80 {strides = array<i32>} : memref<72x256xf32, #tpu.memory_space<vmem>>, vector<8x241xf32>,
    %cst_59 = arith.constant 0.000000e+00 : f32
    %82 = vector.broadcast %cst_59 : f32 to vector<8x15xf32>
    %c16_60 = arith.constant 16 : index
    %c0_61 = arith.constant 0 : index
    %83 = vector.load %arg9[%c16_60, %c0_61] : memref<72x256xf32, #tpu.memory_space<vmem>>, vector<8x15xf32>
    tpu.vector_store %arg9[%c16_60, %c0_61], %82 {strides = array<i32>} : memref<72x256xf32, #tpu.memory_space<vmem>>, vector<8x15xf32>,
    %84 = vector.extract_strided_slice %65 {offsets = [0, 0], sizes = [8, 255], strides = [1, 1]} : vector<8x256xf32> to vector<8x255xf32>
    %c24_62 = arith.constant 24 : index
    %c1_63 = arith.constant 1 : index
    %85 = vector.load %arg9[%c24_62, %c1_63] : memref<72x256xf32, #tpu.memory_space<vmem>>, vector<8x255xf32>
    tpu.vector_store %arg9[%c24_62, %c1_63], %84 {strides = array<i32>} : memref<72x256xf32, #tpu.memory_space<vmem>>, vector<8x255xf32>,
    %cst_64 = arith.constant 0.000000e+00 : f32
    %86 = vector.broadcast %cst_64 : f32 to vector<8x1xf32>
    %c24_65 = arith.constant 24 : index
    %c0_66 = arith.constant 0 : index
    %87 = vector.load %arg9[%c24_65, %c0_66] : memref<72x256xf32, #tpu.memory_space<vmem>>, vector<8x1xf32>
    tpu.vector_store %arg9[%c24_65, %c0_66], %86 {strides = array<i32>} : memref<72x256xf32, #tpu.memory_space<vmem>>, vector<8x1xf32>,
    %c32_67 = arith.constant 32 : index
    %c0_68 = arith.constant 0 : index
    %88 = vector.load %arg9[%c32_67, %c0_68] : memref<72x256xf32, #tpu.memory_space<vmem>>, vector<8x256xf32>
    tpu.vector_store %arg9[%c32_67, %c0_68], %53 {strides = array<i32>} : memref<72x256xf32, #tpu.memory_space<vmem>>, vector<8x256xf32>,
    %89 = vector.extract_strided_slice %71 {offsets = [0, 1], sizes = [8, 255], strides = [1, 1]} : vector<8x256xf32> to vector<8x255xf32>
    %c40 = arith.constant 40 : index
    %c0_69 = arith.constant 0 : index
    %90 = vector.load %arg9[%c40, %c0_69] : memref<72x256xf32, #tpu.memory_space<vmem>>, vector<8x255xf32>
    tpu.vector_store %arg9[%c40, %c0_69], %89 {strides = array<i32>} : memref<72x256xf32, #tpu.memory_space<vmem>>, vector<8x255xf32>,
    %cst_70 = arith.constant 0.000000e+00 : f32
    %91 = vector.broadcast %cst_70 : f32 to vector<8x1xf32>
    %c40_71 = arith.constant 40 : index
    %c255_72 = arith.constant 255 : index
    %92 = vector.load %arg9[%c40_71, %c255_72] : memref<72x256xf32, #tpu.memory_space<vmem>>, vector<8x1xf32>
    tpu.vector_store %arg9[%c40_71, %c255_72], %91 {strides = array<i32>} : memref<72x256xf32, #tpu.memory_space<vmem>>, vector<8x1xf32>,
    %93 = vector.extract_strided_slice %65 {offsets = [0, 15], sizes = [8, 241], strides = [1, 1]} : vector<8x256xf32> to vector<8x241xf32>
    %c48 = arith.constant 48 : index
    %c0_73 = arith.constant 0 : index
    %94 = vector.load %arg9[%c48, %c0_73] : memref<72x256xf32, #tpu.memory_space<vmem>>, vector<8x241xf32>
    tpu.vector_store %arg9[%c48, %c0_73], %93 {strides = array<i32>} : memref<72x256xf32, #tpu.memory_space<vmem>>, vector<8x241xf32>,
    %cst_74 = arith.constant 0.000000e+00 : f32
    %95 = vector.broadcast %cst_74 : f32 to vector<8x15xf32>
    %c48_75 = arith.constant 48 : index
    %c241_76 = arith.constant 241 : index
    %96 = vector.load %arg9[%c48_75, %c241_76] : memref<72x256xf32, #tpu.memory_space<vmem>>, vector<8x15xf32>
    tpu.vector_store %arg9[%c48_75, %c241_76], %95 {strides = array<i32>} : memref<72x256xf32, #tpu.memory_space<vmem>>, vector<8x15xf32>,
    %97 = vector.extract_strided_slice %53 {offsets = [0, 16], sizes = [8, 240], strides = [1, 1]} : vector<8x256xf32> to vector<8x240xf32>
    %c56 = arith.constant 56 : index
    %c0_77 = arith.constant 0 : index
    %98 = vector.load %arg9[%c56, %c0_77] : memref<72x256xf32, #tpu.memory_space<vmem>>, vector<8x240xf32>
    tpu.vector_store %arg9[%c56, %c0_77], %97 {strides = array<i32>} : memref<72x256xf32, #tpu.memory_space<vmem>>, vector<8x240xf32>,
    %cst_78 = arith.constant 0.000000e+00 : f32
    %99 = vector.broadcast %cst_78 : f32 to vector<8x16xf32>
    %c56_79 = arith.constant 56 : index
    %c240_80 = arith.constant 240 : index
    %100 = vector.load %arg9[%c56_79, %c240_80] : memref<72x256xf32, #tpu.memory_space<vmem>>, vector<8x16xf32>
    tpu.vector_store %arg9[%c56_79, %c240_80], %99 {strides = array<i32>} : memref<72x256xf32, #tpu.memory_space<vmem>>, vector<8x16xf32>,
    %101 = vector.extract_strided_slice %71 {offsets = [0, 17], sizes = [8, 239], strides = [1, 1]} : vector<8x256xf32> to vector<8x239xf32>
    %c64 = arith.constant 64 : index
    %c0_81 = arith.constant 0 : index
    %102 = vector.load %arg9[%c64, %c0_81] : memref<72x256xf32, #tpu.memory_space<vmem>>, vector<8x239xf32>
    tpu.vector_store %arg9[%c64, %c0_81], %101 {strides = array<i32>} : memref<72x256xf32, #tpu.memory_space<vmem>>, vector<8x239xf32>,
    %cst_82 = arith.constant 0.000000e+00 : f32
    %103 = vector.broadcast %cst_82 : f32 to vector<8x17xf32>
    %c64_83 = arith.constant 64 : index
    %c239_84 = arith.constant 239 : index
    %104 = vector.load %arg9[%c64_83, %c239_84] : memref<72x256xf32, #tpu.memory_space<vmem>>, vector<8x17xf32>
    tpu.vector_store %arg9[%c64_83, %c239_84], %103 {strides = array<i32>} : memref<72x256xf32, #tpu.memory_space<vmem>>, vector<8x17xf32>,
    %c0_85 = arith.constant 0 : index
    %c0_86 = arith.constant 0 : index
    %105 = vector.load %arg4[%c0_85, %c0_86] : memref<8x72xbf16, #tpu.memory_space<vmem>>, vector<8x72xbf16>
    %c0_87 = arith.constant 0 : index
    %c0_88 = arith.constant 0 : index
    %106 = vector.load %arg9[%c0_87, %c0_88] : memref<72x256xf32, #tpu.memory_space<vmem>>, vector<72x256xf32>
    %107 = arith.truncf %106 : vector<72x256xf32> to vector<72x256xbf16>
    %cst_89 = arith.constant dense<0.000000e+00> : vector<8x256xf32>
    %108 = tpu.matmul %105, %107, %cst_89 {dimension_numbers = #tpu.dot_dimension_numbers<[1], [0], [0], [1], [0, 0, 1, 1], [], []>} : vector<8x72xbf16>, vector<72x256xbf16>, vector<8x256xf32> -> vector<8x256xf32>
    %109 = arith.addf %59, %108 : vector<8x256xf32>
    %cst_90 = arith.constant 0.000000e+00 : f32
    %110 = vector.broadcast %cst_90 : f32 to vector<8x256xf32>
    %111 = arith.maximumf %109, %110 : vector<8x256xf32>
    %c0_91 = arith.constant 0 : index
    %c0_92 = arith.constant 0 : index
    %c0_93 = arith.constant 0 : index
    %112 = vector.load %arg7[%c0_91, %c0_92, %c0_93] : memref<1x8x256xf32, #tpu.memory_space<vmem>>, vector<1x8x256xf32>
    %113 = vector.shape_cast %112 : vector<1x8x256xf32> to vector<8x256xf32>
    %114 = vector.shape_cast %111 : vector<8x256xf32> to vector<1x8x256xf32>
    tpu.vector_store %arg7[%c0_91, %c0_92, %c0_93], %114 {strides = array<i32>} : memref<1x8x256xf32, #tpu.memory_space<vmem>>, vector<1x8x256xf32>,
    return
  }
  func.func @transform_0(%arg0: i32) -> (i32, i32) {
    %c0_i32 = arith.constant 0 : i32
    %c0_i32_0 = arith.constant 0 : i32
    %c0_i32_1 = arith.constant 0 : i32
    return %c0_i32, %c0_i32_0 : i32, i32
  }
  func.func @transform_1(%arg0: i32) -> (i32, i32, i32) {
    %c0_i32 = arith.constant 0 : i32
    %c0_i32_0 = arith.constant 0 : i32
    %c0_i32_1 = arith.constant 0 : i32
    return %arg0, %c0_i32, %c0_i32_0 : i32, i32, i32
  }
  func.func @transform_2(%arg0: i32) -> (i32, i32) {
    %c0_i32 = arith.constant 0 : i32
    %c0_i32_0 = arith.constant 0 : i32
    %c0_i32_1 = arith.constant 0 : i32
    return %c0_i32, %c0_i32_0 : i32, i32
  }
  func.func @transform_3(%arg0: i32) -> (i32, i32) {
    %c0_i32 = arith.constant 0 : i32
    %c0_i32_0 = arith.constant 0 : i32
    %c0_i32_1 = arith.constant 0 : i32
    return %c0_i32, %c0_i32_0 : i32, i32
  }
  func.func @transform_4(%arg0: i32) -> (i32, i32) {
    %c0_i32 = arith.constant 0 : i32
    %c0_i32_0 = arith.constant 0 : i32
    %c0_i32_1 = arith.constant 0 : i32
    return %c0_i32, %c0_i32_0 : i32, i32
  }
  func.func @transform_5(%arg0: i32) -> (i32, i32) {
    %c0_i32 = arith.constant 0 : i32
    %c0_i32_0 = arith.constant 0 : i32
    %c0_i32_1 = arith.constant 0 : i32
    return %c0_i32, %c0_i32_0 : i32, i32
  }
  func.func @transform_6(%arg0: i32) -> (i32, i32, i32) {
    %c0_i32 = arith.constant 0 : i32
    %c0_i32_0 = arith.constant 0 : i32
    %c0_i32_1 = arith.constant 0 : i32
    return %arg0, %c0_i32, %c0_i32_0 : i32, i32, i32
  }
}

</mosaic_0001>

<llo_original>
// kernel: tpu_custom_call.1
$region0: #{tpu_custom_call.1}
  #allocation0 [shape = 'u32[]', space=smem, size = 0x4, offset = 0x4, fixed_abs, tag = 'smem constant byte address 0x4 - core index']
  #allocation1 [shape = 'u32[72,128]{1,0:T(1,128)}', space=vmem, size = 0x9000, scoped, tag = 'internal scratch']
  #allocation2 [shape = 'f32[36,256]{1,0:T(8,128)}', space=vmem, size = 0xa000, scoped, tag = 'scratch operand']
  #allocation3 [shape = 'f32[72,256]{1,0:T(8,128)}', space=vmem, size = 0x12000, scoped, tag = 'scratch operand']
  %s0 = inlined_call_operand.vmem [shape: s32[1,256], index: 0, kind: input, shape index: {}]
  %s1 = inlined_call_operand.hbm [shape: f32[2,4,256], index: 1, kind: input, shape index: {}]
  %s2 = inlined_call_operand.vmem [shape: bf16[8,36], index: 2, kind: input, shape index: {}]
  %s3 = inlined_call_operand.vmem [shape: bf16[8,72], index: 3, kind: input, shape index: {}]
  %s4 = inlined_call_operand.vmem [shape: bf16[8,4], index: 4, kind: input, shape index: {}]
  %s5 = inlined_call_operand.vmem [shape: f32[8,1], index: 5, kind: input, shape index: {}]
  %s6 = inlined_call_operand.hbm [shape: f32[2,8,256], index: 6, kind: output, shape index: {}]
  %s7 = sld [smem:[#allocation0]]
  $region61: #{tpu_custom_call.1} parent=0
    _
  %s9 = ssub.s32 1, %s7
  %s10 = scalar_select 0, %s9, %s7
  $region1: #{tpu_custom_call.1} parent=0
    #allocation4 [shape = 'u8[8192]{0}', space=vmem, size = 0x2000, scoped, tag = 'input window, operand 1']
    #allocation5 [shape = 's32[2]{0}', space=sflag, size = 0x8, scoped, tag = 'scoped memory for tpu_custom_call.1']
    #allocation6 [shape = 's32[2]{0}', space=sflag, size = 0x8, scoped, tag = 'scoped memory for tpu_custom_call.1']
    #allocation7 [shape = 'u8[16384]{0}', space=vmem, size = 0x4000, scoped, tag = 'output window, operand 0']
    %11 = vsyncpa [#allocation5], 0
    %s12 = scalar_lea.sflag [#allocation5], 1
    %13 = vsyncpa %s12, 0
    %14 = vsyncpa [#allocation6], 0
    %s15 = scalar_lea.sflag [#allocation6], 1
    %16 = vsyncpa %s15, 0
    loop: start=0, step=1, limit=4
    $region2: #{tpu_custom_call.1} parent=1 // loop_pre_header
      _
    $region3: #{tpu_custom_call.1} parent=1 // loop_header
      %s18 = sphi 0, %s22
      %p19 = scmp.ge.s32.totalorder %s18, 4
      %s26 = sphi 0, %s26
      %s28 = sphi 0, %s26
      %s29 = sphi 0, %s28
      %s43 = sphi 0, %s29
      %s49 = sphi 0, %s51
      %s52 = sphi 0, %s49
      %s53 = sphi 0, %s52
      %s69 = sphi 0, %s53
      %s73 = sphi 0, %s73
      %s75 = sphi 0, %s73
      %s76 = sphi 0, %s75
      %s90 = sphi 0, %s76
      %s94 = sphi 0, %s94
      %s96 = sphi 0, %s94
      %s97 = sphi 0, %s96
      %s111 = sphi 0, %s97
      %s115 = sphi 0, %s115
      %s117 = sphi 0, %s115
      %s118 = sphi 0, %s117
      %s132 = sphi 0, %s118
      %s136 = sphi 0, %s136
      %s138 = sphi 0, %s136
      %s139 = sphi 0, %s138
      %s153 = sphi 0, %s139
      %s159 = sphi 0, %s161
      %s162 = sphi 0, %s159
      %s163 = sphi 0, %s162
      %s179 = sphi 0, %s163
    $region4: #{tpu_custom_call.1} parent=1 // loop_header_branch
      %21 = sbr.rel (%p19) target = $region8
    $region5: #{tpu_custom_call.1} parent=1 // loop_body
      %s23 = ssub.s32 %s18, 1
      %s24 = ssub.s32 %s18, 2
      %s25 = sadd.s32 %s18, 1
      %s27 = sadd.s32 %s26, 1
      %p30 = scmp.eq.s32.totalorder %s18, 1
      %p31 = scmp.ne.s32.totalorder %s26, %s28
      %p32 = scmp.eq.s32.totalorder %s18, 0
      %p33 = por %p31, %p32
      %p34 = scmp.ne.s32.totalorder %s26, %s28
      %p35 = scmp.eq.s32.totalorder %s23, 1
      %p36 = por %p34, %p35
      %p37 = scmp.ne.s32.totalorder %s28, %s29
      %p38 = scmp.eq.s32.totalorder %s23, 0
      %p39 = por %p37, %p38
      %p40 = scmp.ne.s32.totalorder %s28, %s29
      %p41 = scmp.eq.s32.totalorder %s24, 1
      %p42 = por %p40, %p41
      %p44 = scmp.ne.s32.totalorder %s29, %s43
      %p45 = scmp.eq.s32.totalorder %s24, 0
      %p46 = por %p44, %p45
      %s47 = ssub.s32 %s18, %s25
      %p48 = scmp.eq.s32.totalorder %s47, 0
      %s50 = sadd.s32 %s49, 1
      %s51 = scalar_select %p48, %s49, %s50
      %p54 = pneg %p48
      %p55 = scmp.eq.s32.totalorder %s18, 1
      %p56 = por %p54, %p55
      %p57 = scmp.ne.s32.totalorder %s49, %s52
      %p58 = scmp.eq.s32.totalorder %s18, 0
      %p59 = por %p57, %p58
      %p60 = scmp.ne.s32.totalorder %s49, %s52
      %p61 = scmp.eq.s32.totalorder %s23, 1
      %p62 = por %p60, %p61
      %p63 = scmp.ne.s32.totalorder %s52, %s53
      %p64 = scmp.eq.s32.totalorder %s23, 0
      %p65 = por %p63, %p64
      %p66 = scmp.ne.s32.totalorder %s52, %s53
      %p67 = scmp.eq.s32.totalorder %s24, 1
      %p68 = por %p66, %p67
      %p70 = scmp.ne.s32.totalorder %s53, %s69
      %p71 = scmp.eq.s32.totalorder %s24, 0
      %p72 = por %p70, %p71
      %s74 = sadd.s32 %s73, 1
      %p77 = scmp.eq.s32.totalorder %s18, 1
      %p78 = scmp.ne.s32.totalorder %s73, %s75
      %p79 = scmp.eq.s32.totalorder %s18, 0
      %p80 = por %p78, %p79
      %p81 = scmp.ne.s32.totalorder %s73, %s75
      %p82 = scmp.eq.s32.totalorder %s23, 1
      %p83 = por %p81, %p82
      %p84 = scmp.ne.s32.totalorder %s75, %s76
      %p85 = scmp.eq.s32.totalorder %s23, 0
      %p86 = por %p84, %p85
      %p87 = scmp.ne.s32.totalorder %s75, %s76
      %p88 = scmp.eq.s32.totalorder %s24, 1
      %p89 = por %p87, %p88
      %p91 = scmp.ne.s32.totalorder %s76, %s90
      %p92 = scmp.eq.s32.totalorder %s24, 0
      %p93 = por %p91, %p92
      %s95 = sadd.s32 %s94, 1
      %p98 = scmp.eq.s32.totalorder %s18, 1
      %p99 = scmp.ne.s32.totalorder %s94, %s96
      %p100 = scmp.eq.s32.totalorder %s18, 0
      %p101 = por %p99, %p100
      %p102 = scmp.ne.s32.totalorder %s94, %s96
      %p103 = scmp.eq.s32.totalorder %s23, 1
      %p104 = por %p102, %p103
      %p105 = scmp.ne.s32.totalorder %s96, %s97
      %p106 = scmp.eq.s32.totalorder %s23, 0
      %p107 = por %p105, %p106
      %p108 = scmp.ne.s32.totalorder %s96, %s97
      %p109 = scmp.eq.s32.totalorder %s24, 1
      %p110 = por %p108, %p109
      %p112 = scmp.ne.s32.totalorder %s97, %s111
      %p113 = scmp.eq.s32.totalorder %s24, 0
      %p114 = por %p112, %p113
      %s116 = sadd.s32 %s115, 1
      %p119 = scmp.eq.s32.totalorder %s18, 1
      %p120 = scmp.ne.s32.totalorder %s115, %s117
      %p121 = scmp.eq.s32.totalorder %s18, 0
      %p122 = por %p120, %p121
      %p123 = scmp.ne.s32.totalorder %s115, %s117
      %p124 = scmp.eq.s32.totalorder %s23, 1
      %p125 = por %p123, %p124
      %p126 = scmp.ne.s32.totalorder %s117, %s118
      %p127 = scmp.eq.s32.totalorder %s23, 0
      %p128 = por %p126, %p127
      %p129 = scmp.ne.s32.totalorder %s117, %s118
      %p130 = scmp.eq.s32.totalorder %s24, 1
      %p131 = por %p129, %p130
      %p133 = scmp.ne.s32.totalorder %s118, %s132
      %p134 = scmp.eq.s32.totalorder %s24, 0
      %p135 = por %p133, %p134
      %s137 = sadd.s32 %s136, 1
      %p140 = scmp.eq.s32.totalorder %s18, 1
      %p141 = scmp.ne.s32.totalorder %s136, %s138
      %p142 = scmp.eq.s32.totalorder %s18, 0
      %p143 = por %p141, %p142
      %p144 = scmp.ne.s32.totalorder %s136, %s138
      %p145 = scmp.eq.s32.totalorder %s23, 1
      %p146 = por %p144, %p145
      %p147 = scmp.ne.s32.totalorder %s138, %s139
      %p148 = scmp.eq.s32.totalorder %s23, 0
      %p149 = por %p147, %p148
      %p150 = scmp.ne.s32.totalorder %s138, %s139
      %p151 = scmp.eq.s32.totalorder %s24, 1
      %p152 = por %p150, %p151
      %p154 = scmp.ne.s32.totalorder %s139, %s153
      %p155 = scmp.eq.s32.totalorder %s24, 0
      %p156 = por %p154, %p155
      %s157 = ssub.s32 %s18, %s25
      %p158 = scmp.eq.s32.totalorder %s157, 0
      %s160 = sadd.s32 %s159, 1
      %s161 = scalar_select %p158, %s159, %s160
      %p164 = pneg %p158
      %p165 = scmp.eq.s32.totalorder %s18, 1
      %p166 = por %p164, %p165
      %p167 = scmp.ne.s32.totalorder %s159, %s162
      %p168 = scmp.eq.s32.totalorder %s18, 0
      %p169 = por %p167, %p168
      %p170 = scmp.ne.s32.totalorder %s159, %s162
      %p171 = scmp.eq.s32.totalorder %s23, 1
      %p172 = por %p170, %p171
      %p173 = scmp.ne.s32.totalorder %s162, %s163
      %p174 = scmp.eq.s32.totalorder %s23, 0
      %p175 = por %p173, %p174
      %p176 = scmp.ne.s32.totalorder %s162, %s163
      %p177 = scmp.eq.s32.totalorder %s24, 1
      %p178 = por %p176, %p177
      %p180 = scmp.ne.s32.totalorder %s163, %s179
      %p181 = scmp.eq.s32.totalorder %s24, 0
      %p182 = por %p180, %p181
      %p183 = scmp.le.s32.totalorder 1, %s18
      %p184 = scmp.lt.s32.totalorder %s18, 3
      %p185 = pnand %p183, %p184
      %p186 = pneg %p185
      // Predicated region
      $region9: #{tpu_custom_call.1} parent=5 // pred_check
        _
      $region10: #{tpu_custom_call.1} parent=5 // pred_check_branch
        %188 = sbr.rel (%p185) target = $region12
      $region11: #{tpu_custom_call.1} parent=5 // pred_region
        %s189 = ssub.s32 %s18, 1
        // Predicated region
        $region13: #{tpu_custom_call.1} parent=11 // pred_check
          %p190 = pneg %p39
        $region14: #{tpu_custom_call.1} parent=11 // pred_check_branch
          %192 = sbr.rel (%p190) target = $region16
        $region15: #{tpu_custom_call.1} parent=11 // pred_region
          _
        $region16: #{tpu_custom_call.1} parent=11 // pred_fallthru
          _
        // Predicated region
        $region17: #{tpu_custom_call.1} parent=11 // pred_check
          %p193 = pneg %p86
        $region18: #{tpu_custom_call.1} parent=11 // pred_check_branch
          %195 = sbr.rel (%p193) target = $region20
        $region19: #{tpu_custom_call.1} parent=11 // pred_region
          _
        $region20: #{tpu_custom_call.1} parent=11 // pred_fallthru
          _
        // Predicated region
        $region21: #{tpu_custom_call.1} parent=11 // pred_check
          %p196 = pneg %p107
        $region22: #{tpu_custom_call.1} parent=11 // pred_check_branch
          %198 = sbr.rel (%p196) target = $region24
        $region23: #{tpu_custom_call.1} parent=11 // pred_region
          _
        $region24: #{tpu_custom_call.1} parent=11 // pred_fallthru
          _
        // Predicated region
        $region25: #{tpu_custom_call.1} parent=11 // pred_check
          %p199 = pneg %p128
        $region26: #{tpu_custom_call.1} parent=11 // pred_check_branch
          %201 = sbr.rel (%p199) target = $region28
        $region27: #{tpu_custom_call.1} parent=11 // pred_region
          _
        $region28: #{tpu_custom_call.1} parent=11 // pred_fallthru
          _
        // Predicated region
        $region29: #{tpu_custom_call.1} parent=11 // pred_check
          %p202 = pneg %p149
        $region30: #{tpu_custom_call.1} parent=11 // pred_check_branch
          %204 = sbr.rel (%p202) target = $region32
        $region31: #{tpu_custom_call.1} parent=11 // pred_region
          _
        $region32: #{tpu_custom_call.1} parent=11 // pred_fallthru
          _
      $region12: #{tpu_custom_call.1} parent=5 // pred_fallthru
        _
      %p205 = scmp.lt.s32.totalorder %s18, 2
      // Predicated region
      $region33: #{tpu_custom_call.1} parent=5 // pred_check
        %p206 = pneg %p205
      $region34: #{tpu_custom_call.1} parent=5 // pred_check_branch
        %208 = sbr.rel (%p206) target = $region36
      $region35: #{tpu_custom_call.1} parent=5 // pred_region
        // Predicated region
        $region37: #{tpu_custom_call.1} parent=35 // pred_check
          %p209 = pneg %p59
        $region38: #{tpu_custom_call.1} parent=35 // pred_check_branch
          %211 = sbr.rel (%p209) target = $region40
        $region39: #{tpu_custom_call.1} parent=35 // pred_region
          %s212 = sand.u32 %s49, 1
          %s213 = scalar_lea.sflag [#allocation5], %s212
          %s214 = sand.u32 %s49, 1
          %s215 = smul.addr %s214, 8
          %s216 = scalar_lea.vmem [#allocation4], %s215
          %218 = vsyncadd %s213, 0
          %s219 = smul.addr %s18, 2
          %s220 = smul.addr %s219, 4
          %s221 = scalar_lea.hbm %s1, %s220
          %s223 = sshll.u32 %s221, 4
          %s224 = int_to_ptr.hbm [resolvable:$true] %s223
          %s225 = sshll.u32 %s216, 4
          %s226 = int_to_ptr.vmem [resolvable:$true] %s225
          %228 = dma.hbm_to_vmem [thread:$0]  %s224, 128, %s226, %s213
        $region40: #{tpu_custom_call.1} parent=35 // pred_fallthru
          _
      $region36: #{tpu_custom_call.1} parent=5 // pred_fallthru
        _
      %p229 = scmp.le.s32.totalorder 1, %s18
      %p230 = scmp.lt.s32.totalorder %s18, 3
      %p231 = pnand %p229, %p230
      %p232 = pneg %p231
      // Predicated region
      $region41: #{tpu_custom_call.1} parent=5 // pred_check
        _
      $region42: #{tpu_custom_call.1} parent=5 // pred_check_branch
        %234 = sbr.rel (%p231) target = $region44
      $region43: #{tpu_custom_call.1} parent=5 // pred_region
        %s235 = ssub.s32 %s18, 1
        %s236 = sand.u32 %s52, 1
        %s237 = scalar_lea.sflag [#allocation5], %s236
        %s238 = sand.u32 %s52, 1
        %s239 = smul.addr %s238, 8
        %s240 = scalar_lea.vmem [#allocation4], %s239
        // Predicated region
        $region45: #{tpu_custom_call.1} parent=43 // pred_check
          %p241 = pneg %p65
        $region46: #{tpu_custom_call.1} parent=43 // pred_check_branch
          %243 = sbr.rel (%p241) target = $region48
        $region47: #{tpu_custom_call.1} parent=43 // pred_region
          %245 = dma.done %s237, 128
        $region48: #{tpu_custom_call.1} parent=43 // pred_fallthru
          _
        %p246 = pneg %p39
        %p247 = pneg %p36
        %s248 = sand.u32 %s52, 1
        %s249 = scalar_lea.sflag [#allocation5], %s248
        %s250 = sand.u32 %s52, 1
        %s251 = smul.addr %s250, 8
        %s252 = scalar_lea.vmem [#allocation4], %s251
        %p253 = pneg %p65
        %p254 = pneg %p62
        %p255 = pneg %p86
        %p256 = pneg %p83
        %p257 = pneg %p107
        %p258 = pneg %p104
        %p259 = pneg %p128
        %p260 = pneg %p125
        %p261 = pneg %p149
        %p262 = pneg %p146
        %p263 = pneg %p175
        %p264 = pneg %p172
        %s265 = sand.u32 %s162, 1
        %s266 = scalar_lea.sflag [#allocation6], %s265
        %s267 = sand.u32 %s162, 1
        %s268 = smul.addr %s267, 16
        %s269 = scalar_lea.vmem [#allocation7], %s268
        %v271 = vld [vmem:[%s0] sm:$0x3]
        %v272 = vld [vmem:[%s240] sm:$0xff]
        %vm273 = vcmp.ne.s32.totalorder %v271, 15
        %v274 = vsel %vm273, 1, 0
        %v275 = vperm.slane %v274, 0
        %v276 = vperm.slane %v274, 1
        %vm277 = vcmp.eq.s32.totalorder %v275, 1
        %vm278 = vcmp.eq.s32.totalorder %v276, 1
        %280 = vst [vmem:[#allocation1] ss:$2 sm:$0xff] %v272
        %v281 = vld.sshfl [vmem:[#allocation1] sm:$0xff pattern:$0x75316420]
        %v282 = vld.sshfl [vmem:[#allocation1 + $0x8] sm:$0xff pattern:$0x75316420]
        %v285 = vsel %vm277, %v281, 0.0
        %v286 = vsel %vm278, %v282, 0.0
        %vm287 = vcmp.ne.s32.totalorder %v271, 0
        %v288 = vsel %vm287, 1, 0
        %v289 = vperm.slane %v288, 0
        %v290 = vperm.slane %v288, 1
        %vm291 = vcmp.eq.s32.totalorder %v289, 1
        %vm292 = vcmp.eq.s32.totalorder %v290, 1
        %293 = vst [vmem:[#allocation1] ss:$2 sm:$0xff] %v272
        %v294 = vld.sshfl [vmem:[#allocation1] sm:$0xff pattern:$0x75316420]
        %v295 = vld.sshfl [vmem:[#allocation1 + $0x8] sm:$0xff pattern:$0x75316420]
        %v298 = vsel %vm291, %v294, 0.0
        %v299 = vsel %vm292, %v295, 0.0
        %302 = vrot.lane.b32.xlu0 %v285, 17
        %v303 = vpop.permute.xlu0 %302
        %304 = vrot.lane.b32.xlu0 %v286, 17
        %v305 = vpop.permute.xlu0 %304
        %vm306 = vcmask 138240
        %v307 = vsel %vm306, %v303, %v305
        %vm310 = vcmask 1043592
        %311 = vst.msk [vmem:[#allocation2] sm:$0xf] %vm310, %v303
        %312 = vst [vmem:[#allocation2 + $0x8] sm:$0xf] %v307
        %vm313 = vcmask 134144
        %314 = vst.msk [vmem:[#allocation2] sm:$0xf] %vm313, 0.0
        %s315 = scalar_lea.vmem [#allocation1], 1
        %316 = vst [vmem:[%s315] ss:$2 sm:$0xff] %v272
        %v317 = vld.sshfl [vmem:[#allocation1] sm:$0xff pattern:$0x75316420]
        %v318 = vld.sshfl [vmem:[#allocation1 + $0x8] sm:$0xff pattern:$0x75316420]
        %319 = vrot.lane.b32.xlu0 %v317, 16
        %v320 = vpop.permute.xlu0 %319
        %321 = vrot.lane.b32.xlu0 %v318, 16
        %v322 = vpop.permute.xlu0 %321
        %vm323 = vcmask 130048
        %v324 = vsel %vm323, %v320, %v322
        %vm327 = vcmask 1047684
        %328 = vst.msk [vmem:[#allocation2] sm:$0xf0] %vm327, %v320
        %329 = vst [vmem:[#allocation2 + $0x8] sm:$0xf0] %v324
        %vm330 = vcmask 130052
        %331 = vst.msk [vmem:[#allocation2] sm:$0xf0] %vm330, 0.0
        %334 = vrot.lane.b32.xlu0 %v298, 15
        %v335 = vpop.permute.xlu0 %334
        %336 = vrot.lane.b32.xlu0 %v299, 15
        %v337 = vpop.permute.xlu0 %336
        %vm338 = vcmask 121856
        %v339 = vsel %vm338, %v335, %v337
        %vm342 = vcmask 1043576
        %343 = vst.msk [vmem:[#allocation2 + $0x10] sm:$0xf] %vm342, %v335
        %344 = vst [vmem:[#allocation2 + $0x18] sm:$0xf] %v339
        %vm345 = vcmask 117760
        %346 = vst.msk [vmem:[#allocation2 + $0x10] sm:$0xf] %vm345, 0.0
        %v347 = vrot.slane %v285, 4
        %v348 = vrot.slane %v286, 4
        %349 = vrot.lane.b32.xlu0 %v347, 1
        %v350 = vpop.permute.xlu0 %349
        %351 = vrot.lane.b32.xlu0 %v348, 1
        %v352 = vpop.permute.xlu0 %351
        %vm353 = vcmask 7168
        %v354 = vsel %vm353, %v350, %v352
        %vm357 = vcmask 1047564
        %358 = vst.msk [vmem:[#allocation2 + $0x10] sm:$0xf0] %vm357, %v350
        %359 = vst [vmem:[#allocation2 + $0x18] sm:$0xf0] %v354
        %vm360 = vcmask 7172
        %361 = vst.msk [vmem:[#allocation2 + $0x10] sm:$0xf0] %vm360, 0.0
        %362 = vst [vmem:[#allocation1] ss:$2 sm:$0xff] %v272
        %v363 = vld.sshfl [vmem:[#allocation1] sm:$0xff pattern:$0x75316420]
        %v364 = vld.sshfl [vmem:[#allocation1 + $0x8] sm:$0xff pattern:$0x75316420]
        %367 = vst [vmem:[#allocation2 + $0x20] sm:$0xf] %v363
        %368 = vst [vmem:[#allocation2 + $0x28] sm:$0xf] %v364
        %v369 = vrot.slane %v298, 4
        %v370 = vrot.slane %v299, 4
        %371 = vrot.lane.b32.xlu0 %v369, 127
        %v372 = vpop.permute.xlu0 %371
        %373 = vrot.lane.b32.xlu0 %v370, 127
        %v374 = vpop.permute.xlu0 %373
        %vm375 = vcmask 1039360
        %v376 = vsel %vm375, %v372, %v374
        %379 = vst [vmem:[#allocation2 + $0x20] sm:$0xf0] %v376
        %vm380 = vcmask 1039364
        %381 = vst.msk [vmem:[#allocation2 + $0x28] sm:$0xf0] %vm380, %v374
        %vm382 = vcmask 1048572
        %383 = vst.msk [vmem:[#allocation2 + $0x28] sm:$0xf0] %vm382, 0.0
        %384 = vrot.lane.b32.xlu0 %v285, 113
        %v385 = vpop.permute.xlu0 %384
        %386 = vrot.lane.b32.xlu0 %v286, 113
        %v387 = vpop.permute.xlu0 %386
        %vm388 = vcmask 924672
        %v389 = vsel %vm388, %v385, %v387
        %392 = vst [vmem:[#allocation2 + $0x30] sm:$0xf] %v389
        %vm393 = vcmask 920576
        %394 = vst.msk [vmem:[#allocation2 + $0x38] sm:$0xf] %vm393, %v387
        %vm395 = vcmask 1044360
        %396 = vst.msk [vmem:[#allocation2 + $0x38] sm:$0xf] %vm395, 0.0
        %s397 = scalar_lea.vmem [#allocation1], 1
        %398 = vst [vmem:[%s397] ss:$2 sm:$0xff] %v272
        %v399 = vld.sshfl [vmem:[#allocation1] sm:$0xff pattern:$0x75316420]
        %v400 = vld.sshfl [vmem:[#allocation1 + $0x8] sm:$0xff pattern:$0x75316420]
        %401 = vrot.lane.b32.xlu0 %v399, 112
        %v402 = vpop.permute.xlu0 %401
        %403 = vrot.lane.b32.xlu0 %v400, 112
        %v404 = vpop.permute.xlu0 %403
        %vm405 = vcmask 916480
        %v406 = vsel %vm405, %v402, %v404
        %409 = vst [vmem:[#allocation2 + $0x30] sm:$0xf0] %v406
        %vm410 = vcmask 916484
        %411 = vst.msk [vmem:[#allocation2 + $0x38] sm:$0xf0] %vm410, %v404
        %vm412 = vcmask 1048452
        %413 = vst.msk [vmem:[#allocation2 + $0x38] sm:$0xf0] %vm412, 0.0
        %414 = vrot.lane.b32.xlu0 %v298, 111
        %v415 = vpop.permute.xlu0 %414
        %416 = vrot.lane.b32.xlu0 %v299, 111
        %v417 = vpop.permute.xlu0 %416
        %vm418 = vcmask 908288
        %v419 = vsel %vm418, %v415, %v417
        %422 = vst [vmem:[#allocation2 + $0x40] sm:$0xf] %v419
        %vm423 = vcmask 904192
        %424 = vst.msk [vmem:[#allocation2 + $0x48] sm:$0xf] %vm423, %v417
        %vm425 = vcmask 1044344
        %426 = vst.msk [vmem:[#allocation2 + $0x48] sm:$0xf] %vm425, 0.0
        %v427 = vld [vmem:[%s2] sm:$0xf]
        %v428 = vld [vmem:[#allocation2] sm:$0xff]
        %v429 = vld [vmem:[#allocation2 + $0x8] sm:$0xff]
        %v430 = vld [vmem:[#allocation2 + $0x10] sm:$0xff]
        %v431 = vld [vmem:[#allocation2 + $0x18] sm:$0xff]
        %v432 = vld [vmem:[#allocation2 + $0x20] sm:$0xff]
        %v433 = vld [vmem:[#allocation2 + $0x28] sm:$0xff]
        %v434 = vld [vmem:[#allocation2 + $0x30] sm:$0xff]
        %v435 = vld [vmem:[#allocation2 + $0x38] sm:$0xff]
        %v436 = vld [vmem:[#allocation2 + $0x40] sm:$0xf]
        %v437 = vld [vmem:[#allocation2 + $0x48] sm:$0xf]
        %v438 = vpack.c.bf16 %v430, %v428
        %v439 = vpack.c.bf16 %v431, %v429
        %v440 = vpack.c.bf16 %v434, %v432
        %v441 = vpack.c.bf16 %v435, %v433
        %v442 = vpack.c.bf16 %v436, %v436
        %v443 = vpack.c.bf16 %v437, %v437
        %vm444 = vcmask 293888
        %v446 = vsel %vm444, %v427, 0
        %vm448 = vcmask 1041408
        %v450 = vsel %vm448, %v442, 0
        %v453 = vsel %vm448, %v443, 0
        %455 = vmatpush.bf16.msra.mxu0 0
        %456 = vmatpush.bf16.msra.mxu0 0
        %457 = vmatpush.bf16.msra.mxu0 0
        %458 = vmatpush.bf16.msra.mxu0 0
        %459 = vmatpush.bf16.msra.mxu0 0
        %460 = vmatpush.bf16.msra.mxu0 %v450
        %461 = vmatpush.bf16.msra.mxu0 %v440
        %462 = vmatpush.bf16.msra.mxu0 %v438
        %463 = vmatmul.bf16.gmra.mxu0 %v446
        %v464 = vpop.f32.mrf.mxu0
        %v465 = vadd.f32 0.0, %v464
        %v466 = vpop.f32.mrf.mxu0
        %467 = vdwg.mxu0
        %468 = vmatpush.bf16.msra.mxu0 0
        %469 = vmatpush.bf16.msra.mxu0 0
        %470 = vmatpush.bf16.msra.mxu0 0
        %471 = vmatpush.bf16.msra.mxu0 0
        %472 = vmatpush.bf16.msra.mxu0 0
        %473 = vmatpush.bf16.msra.mxu0 %v453
        %474 = vmatpush.bf16.msra.mxu0 %v441
        %475 = vmatpush.bf16.msra.mxu0 %v439
        %476 = vmatmul.bf16.gmra.mxu0 %v446
        %v477 = vpop.f32.mrf.mxu0
        %v478 = vadd.f32 0.0, %v477
        %v479 = vpop.f32.mrf.mxu0
        %480 = vdwg.mxu0
        %v481 = vmax.f32 %v465, 0.0
        %v482 = vmax.f32 %v478, 0.0
        %v483 = vld [vmem:[%s4] sm:$0xf]
        %484 = vst [vmem:[#allocation1] ss:$2 sm:$0xff] %v272
        %v485 = vld.sshfl [vmem:[#allocation1] sm:$0xff pattern:$0x75316420]
        %v486 = vld.sshfl [vmem:[#allocation1 + $0x8] sm:$0xff pattern:$0x75316420]
        %v489 = vpack.c.bf16 %v485, %v485
        %v490 = vpack.c.bf16 %v486, %v486
        %v491 = vld [vmem:[%s5] sm:$0xff]
        %493 = vset.pattern.permute.xlu0 0
        %494 = vperm.xlu0 %493, %v491
        %v495 = vpop.permute.xlu0 %494
        %vm497 = vcmask 31744
        %v499 = vsel %vm497, %v483, 0
        %v502 = vsel %vm448, %v489, 0
        %v505 = vsel %vm448, %v490, 0
        %507 = vmatpush.bf16.msra.mxu0 0
        %508 = vmatpush.bf16.msra.mxu0 0
        %509 = vmatpush.bf16.msra.mxu0 0
        %510 = vmatpush.bf16.msra.mxu0 0
        %511 = vmatpush.bf16.msra.mxu0 0
        %512 = vmatpush.bf16.msra.mxu0 0
        %513 = vmatpush.bf16.msra.mxu0 0
        %514 = vmatpush.bf16.msra.mxu0 %v502
        %515 = vmatmul.bf16.gmra.mxu0 %v499
        %v516 = vpop.f32.mrf.mxu0
        %v517 = vadd.f32 %v495, %v516
        %v518 = vpop.f32.mrf.mxu0
        %519 = vdwg.mxu0
        %520 = vmatpush.bf16.msra.mxu0 0
        %521 = vmatpush.bf16.msra.mxu0 0
        %522 = vmatpush.bf16.msra.mxu0 0
        %523 = vmatpush.bf16.msra.mxu0 0
        %524 = vmatpush.bf16.msra.mxu0 0
        %525 = vmatpush.bf16.msra.mxu0 0
        %526 = vmatpush.bf16.msra.mxu0 0
        %527 = vmatpush.bf16.msra.mxu0 %v505
        %528 = vmatmul.bf16.gmra.mxu0 %v499
        %v529 = vpop.f32.mrf.mxu0
        %v530 = vadd.f32 %v495, %v529
        %v531 = vpop.f32.mrf.mxu0
        %532 = vdwg.mxu0
        %v533 = vsel %vm277, %v481, 0.0
        %v534 = vsel %vm278, %v482, 0.0
        %v535 = vsel %vm291, %v481, 0.0
        %v536 = vsel %vm292, %v482, 0.0
        %539 = vrot.lane.b32.xlu0 %v533, 17
        %v540 = vpop.permute.xlu0 %539
        %541 = vrot.lane.b32.xlu0 %v534, 17
        %v542 = vpop.permute.xlu0 %541
        %v543 = vsel %vm306, %v540, %v542
        %vm546 = vcmask 1047688
        %547 = vst.msk [vmem:[#allocation3] sm:$0xff] %vm546, %v540
        %548 = vst [vmem:[#allocation3 + $0x8] sm:$0xff] %v543
        %549 = vst.msk [vmem:[#allocation3] sm:$0xff] %vm306, 0.0
        %552 = vrot.lane.b32.xlu0 %v481, 16
        %v553 = vpop.permute.xlu0 %552
        %554 = vrot.lane.b32.xlu0 %v482, 16
        %v555 = vpop.permute.xlu0 %554
        %v556 = vsel %vm323, %v553, %v555
        %vm559 = vcmask 1047680
        %560 = vst.msk [vmem:[#allocation3 + $0x10] sm:$0xff] %vm559, %v553
        %561 = vst [vmem:[#allocation3 + $0x18] sm:$0xff] %v556
        %562 = vst.msk [vmem:[#allocation3 + $0x10] sm:$0xff] %vm323, 0.0
        %565 = vrot.lane.b32.xlu0 %v535, 15
        %v566 = vpop.permute.xlu0 %565
        %567 = vrot.lane.b32.xlu0 %v536, 15
        %v568 = vpop.permute.xlu0 %567
        %v569 = vsel %vm338, %v566, %v568
        %vm572 = vcmask 1047672
        %573 = vst.msk [vmem:[#allocation3 + $0x20] sm:$0xff] %vm572, %v566
        %574 = vst [vmem:[#allocation3 + $0x28] sm:$0xff] %v569
        %575 = vst.msk [vmem:[#allocation3 + $0x20] sm:$0xff] %vm338, 0.0
        %576 = vrot.lane.b32.xlu0 %v533, 1
        %v577 = vpop.permute.xlu0 %576
        %578 = vrot.lane.b32.xlu0 %v534, 1
        %v579 = vpop.permute.xlu0 %578
        %v580 = vsel %vm353, %v577, %v579
        %vm583 = vcmask 1047560
        %584 = vst.msk [vmem:[#allocation3 + $0x30] sm:$0xff] %vm583, %v577
        %585 = vst [vmem:[#allocation3 + $0x38] sm:$0xff] %v580
        %586 = vst.msk [vmem:[#allocation3 + $0x30] sm:$0xff] %vm353, 0.0
        %587 = vst [vmem:[#allocation3 + $0x40] sm:$0xff] %v481
        %588 = vst [vmem:[#allocation3 + $0x48] sm:$0xff] %v482
        %589 = vrot.lane.b32.xlu0 %v535, 127
        %v590 = vpop.permute.xlu0 %589
        %591 = vrot.lane.b32.xlu0 %v536, 127
        %v592 = vpop.permute.xlu0 %591
        %v593 = vsel %vm375, %v590, %v592
        %596 = vst [vmem:[#allocation3 + $0x50] sm:$0xff] %v593
        %597 = vst.msk [vmem:[#allocation3 + $0x58] sm:$0xff] %vm375, %v592
        %vm598 = vcmask 1048568
        %599 = vst.msk [vmem:[#allocation3 + $0x58] sm:$0xff] %vm598, 0.0
        %600 = vrot.lane.b32.xlu0 %v533, 113
        %v601 = vpop.permute.xlu0 %600
        %602 = vrot.lane.b32.xlu0 %v534, 113
        %v603 = vpop.permute.xlu0 %602
        %v604 = vsel %vm388, %v601, %v603
        %607 = vst [vmem:[#allocation3 + $0x60] sm:$0xff] %v604
        %608 = vst.msk [vmem:[#allocation3 + $0x68] sm:$0xff] %vm388, %v603
        %vm609 = vcmask 1048456
        %610 = vst.msk [vmem:[#allocation3 + $0x68] sm:$0xff] %vm609, 0.0
        %611 = vrot.lane.b32.xlu0 %v481, 112
        %v612 = vpop.permute.xlu0 %611
        %613 = vrot.lane.b32.xlu0 %v482, 112
        %v614 = vpop.permute.xlu0 %613
        %v615 = vsel %vm405, %v612, %v614
        %618 = vst [vmem:[#allocation3 + $0x70] sm:$0xff] %v615
        %619 = vst.msk [vmem:[#allocation3 + $0x78] sm:$0xff] %vm405, %v614
        %vm620 = vcmask 1048448
        %621 = vst.msk [vmem:[#allocation3 + $0x78] sm:$0xff] %vm620, 0.0
        %622 = vrot.lane.b32.xlu0 %v535, 111
        %v623 = vpop.permute.xlu0 %622
        %624 = vrot.lane.b32.xlu0 %v536, 111
        %v625 = vpop.permute.xlu0 %624
        %v626 = vsel %vm418, %v623, %v625
        %629 = vst [vmem:[#allocation3 + $0x80] sm:$0xff] %v626
        %630 = vst.msk [vmem:[#allocation3 + $0x88] sm:$0xff] %vm418, %v625
        %vm631 = vcmask 1048440
        %632 = vst.msk [vmem:[#allocation3 + $0x88] sm:$0xff] %vm631, 0.0
        %v633 = vld [vmem:[%s3] sm:$0xf]
        %v634 = vld [vmem:[#allocation3] sm:$0xff]
        %v635 = vld [vmem:[#allocation3 + $0x8] sm:$0xff]
        %v636 = vld [vmem:[#allocation3 + $0x10] sm:$0xff]
        %v637 = vld [vmem:[#allocation3 + $0x18] sm:$0xff]
        %v638 = vld [vmem:[#allocation3 + $0x20] sm:$0xff]
        %v639 = vld [vmem:[#allocation3 + $0x28] sm:$0xff]
        %v640 = vld [vmem:[#allocation3 + $0x30] sm:$0xff]
        %v641 = vld [vmem:[#allocation3 + $0x38] sm:$0xff]
        %v642 = vld [vmem:[#allocation3 + $0x40] sm:$0xff]
        %v643 = vld [vmem:[#allocation3 + $0x48] sm:$0xff]
        %v644 = vld [vmem:[#allocation3 + $0x50] sm:$0xff]
        %v645 = vld [vmem:[#allocation3 + $0x58] sm:$0xff]
        %v646 = vld [vmem:[#allocation3 + $0x60] sm:$0xff]
        %v647 = vld [vmem:[#allocation3 + $0x68] sm:$0xff]
        %v648 = vld [vmem:[#allocation3 + $0x70] sm:$0xff]
        %v649 = vld [vmem:[#allocation3 + $0x78] sm:$0xff]
        %v650 = vld [vmem:[#allocation3 + $0x80] sm:$0xff]
        %v651 = vld [vmem:[#allocation3 + $0x88] sm:$0xff]
        %v652 = vpack.c.bf16 %v636, %v634
        %v653 = vpack.c.bf16 %v637, %v635
        %v654 = vpack.c.bf16 %v640, %v638
        %v655 = vpack.c.bf16 %v641, %v639
        %v656 = vpack.c.bf16 %v644, %v642
        %v657 = vpack.c.bf16 %v645, %v643
        %v658 = vpack.c.bf16 %v648, %v646
        %v659 = vpack.c.bf16 %v649, %v647
        %v660 = vpack.c.bf16 %v650, %v650
        %v661 = vpack.c.bf16 %v651, %v651
        %vm662 = vcmask 588800
        %v664 = vsel %vm662, %v633, 0
        %vm666 = vcmask 1043456
        %v668 = vsel %vm666, %v660, 0
        %v671 = vsel %vm666, %v661, 0
        %673 = vmatpush.bf16.msra.mxu0 0
        %674 = vmatpush.bf16.msra.mxu0 0
        %675 = vmatpush.bf16.msra.mxu0 0
        %676 = vmatpush.bf16.msra.mxu0 %v668
        %677 = vmatpush.bf16.msra.mxu0 %v658
        %678 = vmatpush.bf16.msra.mxu0 %v656
        %679 = vmatpush.bf16.msra.mxu0 %v654
        %680 = vmatpush.bf16.msra.mxu0 %v652
        %681 = vmatmul.bf16.gmra.mxu0 %v664
        %v682 = vpop.f32.mrf.mxu0
        %v683 = vadd.f32 0.0, %v682
        %v684 = vpop.f32.mrf.mxu0
        %685 = vdwg.mxu0
        %686 = vmatpush.bf16.msra.mxu0 0
        %687 = vmatpush.bf16.msra.mxu0 0
        %688 = vmatpush.bf16.msra.mxu0 0
        %689 = vmatpush.bf16.msra.mxu0 %v671
        %690 = vmatpush.bf16.msra.mxu0 %v659
        %691 = vmatpush.bf16.msra.mxu0 %v657
        %692 = vmatpush.bf16.msra.mxu0 %v655
        %693 = vmatpush.bf16.msra.mxu0 %v653
        %694 = vmatmul.bf16.gmra.mxu0 %v664
        %v695 = vpop.f32.mrf.mxu0
        %v696 = vadd.f32 0.0, %v695
        %v697 = vpop.f32.mrf.mxu0
        %698 = vdwg.mxu0
        %v699 = vadd.f32 %v517, %v683
        %v700 = vadd.f32 %v530, %v696
        %v701 = vmax.f32 %v699, 0.0
        %v702 = vmax.f32 %v700, 0.0
        %703 = vst [vmem:[%s269] sm:$0xff] %v701
        %704 = vst [vmem:[%s269 + $0x8] sm:$0xff] %v702
        %s705 = sand.u32 %s162, 1
        %s706 = scalar_lea.sflag [#allocation6], %s705
        %s707 = sand.u32 %s162, 1
        %s708 = smul.addr %s707, 16
        %s709 = scalar_lea.vmem [#allocation7], %s708
        // Predicated region
        $region49: #{tpu_custom_call.1} parent=43 // pred_check
          %p710 = pneg %p172
        $region50: #{tpu_custom_call.1} parent=43 // pred_check_branch
          %712 = sbr.rel (%p710) target = $region52
        $region51: #{tpu_custom_call.1} parent=43 // pred_region
          %714 = vsyncadd %s706, 0
          %s715 = smul.addr %s23, 2
          %s716 = smul.addr %s715, 8
          %s717 = scalar_lea.hbm %s6, %s716
          %s719 = sshll.u32 %s709, 4
          %s720 = int_to_ptr.vmem [resolvable:$true] %s719
          %s721 = sshll.u32 %s717, 4
          %s722 = int_to_ptr.hbm [resolvable:$true] %s721
          %724 = dma.vmem_to_hbm [thread:$0]  %s720, 256, %s722, %s706
        $region52: #{tpu_custom_call.1} parent=43 // pred_fallthru
          _
      $region44: #{tpu_custom_call.1} parent=5 // pred_fallthru
        _
      %p725 = scmp.le.s32.totalorder 2, %s18
      // Predicated region
      $region53: #{tpu_custom_call.1} parent=5 // pred_check
        %p726 = pneg %p725
      $region54: #{tpu_custom_call.1} parent=5 // pred_check_branch
        %728 = sbr.rel (%p726) target = $region56
      $region55: #{tpu_custom_call.1} parent=5 // pred_region
        %s729 = ssub.s32 %s18, 2
        // Predicated region
        $region57: #{tpu_custom_call.1} parent=55 // pred_check
          %p730 = pneg %p178
        $region58: #{tpu_custom_call.1} parent=55 // pred_check_branch
          %732 = sbr.rel (%p730) target = $region60
        $region59: #{tpu_custom_call.1} parent=55 // pred_region
          %s733 = sand.u32 %s163, 1
          %s734 = scalar_lea.sflag [#allocation6], %s733
          %s735 = sand.u32 %s163, 1
          %s736 = smul.addr %s735, 16
          %s737 = scalar_lea.vmem [#allocation7], %s736
          %739 = dma.done %s734, 256
        $region60: #{tpu_custom_call.1} parent=55 // pred_fallthru
          _
      $region56: #{tpu_custom_call.1} parent=5 // pred_fallthru
        _
    $region6: #{tpu_custom_call.1} parent=1 // loop_footer
      %s22 = sadd.s32 1, %s18
    $region7: #{tpu_custom_call.1} parent=1 // loop_footer_branch
      %17 = sbr.rel target = $region3
    $region8: #{tpu_custom_call.1} parent=1 // loop_exit
      _
    %740 = vsyncpa [#allocation5], 1
    %s741 = scalar_lea.sflag [#allocation5], 1
    %742 = vsyncpa %s741, 1
    %743 = vsyncpa [#allocation6], 1
    %s744 = scalar_lea.sflag [#allocation6], 1
    %745 = vsyncpa %s744, 1

</llo_original>
